<compile_context>
chip_gen: v7x
topology: tpu7x:2x2x1
jax: 0.10.0
libtpu: 0.0.40
codegen_flags: <defaults>
</compile_context>

<pallas_src>
import functools

import jax
import jax.numpy as jnp
from jax.experimental import pallas as pl
from jax.experimental.pallas import tpu as pltpu


NUM_CLASSES = 3  # e.g. {background, solar_panel, partial_panel}


def _round_up(x, m):
    return ((x + m - 1) // m) * m


def _choose_hw_tile(hw, b_tile, c, target_bytes=4 << 20):
    """Pick the spatial (lane) tile against a ~4 MiB-per-buffer VMEM budget.

    The VMEM tile pads the sublane dim (C) up to a multiple of 8, so the
    budget uses the padded channel count.  Double-buffering two ~4 MiB input
    tiles plus the tiny resident weights stays far under the default scoped
    VMEM limit on v5e/v6e/v7x.
    """
    c_pad = _round_up(c, 8)
    budget_lanes = max(
        128, (target_bytes // max(1, b_tile * c_pad * 4)) // 128 * 128)
    if hw <= budget_lanes:
        return int(hw)          # full spatial extent in one block (always legal)
    return int(budget_lanes)    # multiple of 128, streamed over the grid


def _detector_kernel(x_ref, w_ref, b_ref, out_ref, acc_ref, *, inv_hw, lane_rem):
    """Streaming GAP + fused linear heads.

    Grid: (batch_blocks, hw_blocks) with the spatial reduction axis last.

    x_ref:   (B_TILE, C, HW_TILE) f32  activation tile (double-buffered DMA)
    w_ref:   (C, N_OUT)           f32  fused head weights (VMEM resident)
    b_ref:   (1, N_OUT)           f32  fused head bias     (VMEM resident)
    out_ref: (B_TILE, N_OUT)      f32  fused head output (written at last hw step)
    acc_ref: (B_TILE, C)          f32  VMEM scratch: running spatial sum
    lane_rem: static int, valid lanes in the last spatial tile (0 => aligned)
    """
    hw = pl.program_id(1)
    n_hw = pl.num_programs(1)

    @pl.when(hw == 0)
    def _():
        acc_ref[...] = jnp.zeros_like(acc_ref)

    if lane_rem == 0:
        # Spatial extent divides the tile: plain cross-lane partial sum (XLU
        # slot — free while the kernel is DMA-bound).
        acc_ref[...] += jnp.sum(x_ref[...], axis=-1)
    else:
        # Ragged spatial extent: mask only the final tile's out-of-bounds
        # lanes (their VMEM contents are unspecified).
        @pl.when(hw < n_hw - 1)
        def _():
            acc_ref[...] += jnp.sum(x_ref[...], axis=-1)

        @pl.when(hw == n_hw - 1)
        def _():
            lane = jax.lax.broadcasted_iota(jnp.int32, x_ref.shape, x_ref.ndim - 1)
            xs = jnp.where(lane < lane_rem, x_ref[...], 0.0)
            acc_ref[...] += jnp.sum(xs, axis=-1)

    @pl.when(hw == n_hw - 1)
    def _():
        feat = acc_ref[...] * inv_hw  # single scale for the true GAP
        out_ref[...] = (
            jnp.dot(feat, w_ref[...], preferred_element_type=jnp.float32)
            + b_ref[...]
        )


def base_detector_forward(x_nchw, params, *, hw_tile=None):
    """Runs the detector head as a single tiled, pipelined Pallas TPU kernel.

    Args:
      x_nchw: (B, C, H, W) float32 input, PyTorch NCHW convention.
      params: dict of deterministic weights/biases (see init_params).
      hw_tile: optional spatial tile override (multiple of 128, or >= H*W).

    Returns:
      dict with "boxes" (B, 4), "scores" (B, 1), "classes" (B, NUM_CLASSES).
    """
    B, C, H, W = x_nchw.shape
    HW = H * W
    x = x_nchw.reshape(B, C, HW).astype(jnp.float32)

    # Fuse the three heads into one matmul: columns = [box(4) | score(1) | cls(NC)].
    w_all = jnp.concatenate(
        [params["w_box"], params["w_score"], params["w_cls"]], axis=1)
    b_all = jnp.concatenate(
        [params["b_box"], params["b_score"], params["b_cls"]], axis=1)
    n_out = w_all.shape[1]

    # Batch tiling: whole (small) batch in one block; 8-row (sublane-aligned)
    # groups for larger batches.  Partial trailing batch blocks are handled by
    # Pallas boundary clamping (garbage rows never mix across rows and the
    # corresponding output rows are discarded).
    b_tile = B if B <= 8 else 8

    if hw_tile is None:
        hw_tile = _choose_hw_tile(HW, b_tile, C)
    hw_tile = int(hw_tile)
    if hw_tile < HW:
        assert hw_tile % 128 == 0, "hw_tile must be a multiple of 128 when tiling"
    else:
        hw_tile = HW  # single spatial block, full extent

    grid = (pl.cdiv(B, b_tile), pl.cdiv(HW, hw_tile))
    lane_rem = HW % hw_tile  # 0 => aligned, no in-kernel masking emitted

    kernel = functools.partial(
        _detector_kernel, inv_hw=1.0 / float(HW), lane_rem=int(lane_rem))

    out_fused = pl.pallas_call(
        kernel,
        out_shape=jax.ShapeDtypeStruct((B, n_out), jnp.float32),
        grid_spec=pltpu.PrefetchScalarGridSpec(
            num_scalar_prefetch=0,
            grid=grid,
            in_specs=[
                # Streamed activation tiles (double-buffered by Pallas).
                pl.BlockSpec((b_tile, C, hw_tile), lambda b, hw: (b, 0, hw)),
                # Fused weights/bias: constant index_map -> resident in VMEM.
                pl.BlockSpec((C, n_out), lambda b, hw: (0, 0)),
                pl.BlockSpec((1, n_out), lambda b, hw: (0, 0)),
            ],
            out_specs=pl.BlockSpec((b_tile, n_out), lambda b, hw: (b, 0)),
            scratch_shapes=[pltpu.VMEM((b_tile, C), jnp.float32)],
        ),
        compiler_params=pltpu.CompilerParams(
            dimension_semantics=("parallel", "arbitrary")),
        cost_estimate=pl.CostEstimate(
            flops=int(2 * B * C * (HW + n_out)),
            transcendentals=0,
            bytes_accessed=int(
                B * C * HW * 4 + (C + 1) * n_out * 4 + B * n_out * 4),
        ),
    )(x, w_all, b_all)

    boxes = out_fused[:, 0:4]
    scores = jax.nn.sigmoid(out_fused[:, 4:5])
    cls_logits = out_fused[:, 5:5 + NUM_CLASSES]
    return {"boxes": boxes, "scores": scores, "classes": cls_logits}


def init_params(channels, num_classes=NUM_CLASSES, seed=0):
    """Deterministic synthetic parameter init (no checkpoint load)."""
    key = jax.random.PRNGKey(seed)
    k_box, k_score, k_cls = jax.random.split(key, 3)
    scale = 1.0 / jnp.sqrt(jnp.float32(channels))
    return {
        "w_box": jax.random.normal(k_box, (channels, 4), jnp.float32) * scale,
        "b_box": jnp.zeros((1, 4), jnp.float32),
        "w_score": jax.random.normal(k_score, (channels, 1), jnp.float32) * scale,
        "b_score": jnp.zeros((1, 1), jnp.float32),
        "w_cls": jax.random.normal(k_cls, (channels, num_classes), jnp.float32) * scale,
        "b_cls": jnp.zeros((1, num_classes), jnp.float32),
    }


def _reference_forward(x_nchw, params):
    """Pure-JAX reference for correctness checking."""
    B, C, H, W = x_nchw.shape
    feat = jnp.mean(x_nchw.reshape(B, C, H * W), axis=-1)
    boxes = feat @ params["w_box"] + params["b_box"]
    scores = jax.nn.sigmoid(feat @ params["w_score"] + params["b_score"])
    cls_logits = feat @ params["w_cls"] + params["b_cls"]
    return {"boxes": boxes, "scores": scores, "classes": cls_logits}


def _check(x, params, **kwargs):
    out = base_detector_forward(x, params, **kwargs)
    out = jax.tree_util.tree_map(jax.block_until_ready, out)
    ref = _reference_forward(x, params)
    for k in ("boxes", "scores", "classes"):
        assert out[k].shape == ref[k].shape, (k, out[k].shape, ref[k].shape)
        assert jnp.allclose(out[k], ref[k], atol=1e-5, rtol=1e-5), k


if __name__ == "__main__":
    # Small deterministic config consistent with the module's NCHW contract.
    B, C, H, W = 2, 4, 16, 16
    key = jax.random.PRNGKey(0)
    x = jax.random.normal(key, (B, C, H, W), dtype=jnp.float32)
    params = init_params(C)

    # Default (auto-sized) spatial tile: single spatial block path.
    _check(x, params)
    # Forced small tile -> multi-step spatial accumulation (pl.when init/finalize).
    _check(x, params, hw_tile=128)

    # Larger spatial map, more reduction steps.
    x2 = jax.random.normal(jax.random.PRNGKey(0), (2, 8, 32, 32), dtype=jnp.float32)
    params2 = init_params(8)
    _check(x2, params2, hw_tile=128)

    # Ragged spatial extent (H*W = 300 not a multiple of 128): exercises the
    # in-kernel boundary-tile masking path (no wrapper-side padding copy).
    x3 = jax.random.normal(jax.random.PRNGKey(0), (2, 8, 20, 15), dtype=jnp.float32)
    _check(x3, params2, hw_tile=128)

    print("KERNEL_OK")
</pallas_src>

<mosaic_0001>
module attributes {stable_mosaic.version = 11 : i64} {
  func.func @_detector_kernel(%arg0: i32, %arg1: i32, %arg2: memref<2x4x256xf32, #tpu.memory_space<vmem>>, %arg3: memref<4x8xf32, #tpu.memory_space<vmem>>, %arg4: memref<1x8xf32, #tpu.memory_space<vmem>>, %arg5: memref<2x8xf32, #tpu.memory_space<vmem>>, %arg6: memref<2x4xf32, #tpu.memory_space<vmem>>) attributes {dimension_semantics = [#tpu.dimension_semantics<parallel>, #tpu.dimension_semantics<arbitrary>], iteration_bounds = array<i64: 1, 1>, scalar_prefetch = 0 : i64, scratch_operands = 1 : i64, tpu.core_type = #tpu.core_type<tc>, window_params = [{transform_indices = @transform_0, window_bounds = array<i64: 2, 4, 256>}, {pipeline_mode = #tpu.pipeline_mode<synchronous>, transform_indices = @transform_1, window_bounds = array<i64: 4, 8>}, {pipeline_mode = #tpu.pipeline_mode<synchronous>, transform_indices = @transform_2, window_bounds = array<i64: 1, 8>}, {transform_indices = @transform_3, window_bounds = array<i64: 2, 8>}]} {
    %c0_i32 = arith.constant 0 : i32
    %0 = arith.cmpi eq, %arg1, %c0_i32 : i32
    %1 = arith.extui %0 : i1 to i32
    %c0_i32_0 = arith.constant 0 : i32
    %2 = arith.cmpi ne, %1, %c0_i32_0 : i32
    scf.if %2 {
      %cst_9 = arith.constant 0.000000e+00 : f32
      %11 = vector.broadcast %cst_9 : f32 to vector<2x4xf32>
      %c0_10 = arith.constant 0 : index
      %c0_11 = arith.constant 0 : index
      %12 = vector.load %arg6[%c0_10, %c0_11] : memref<2x4xf32, #tpu.memory_space<vmem>>, vector<2x4xf32>
      tpu.vector_store %arg6[%c0_10, %c0_11], %11 {strides = array<i32>} : memref<2x4xf32, #tpu.memory_space<vmem>>, vector<2x4xf32>,
    } else {
    }
    %c0 = arith.constant 0 : index
    %c0_1 = arith.constant 0 : index
    %3 = vector.load %arg6[%c0, %c0_1] : memref<2x4xf32, #tpu.memory_space<vmem>>, vector<2x4xf32>
    %c0_2 = arith.constant 0 : index
    %c0_3 = arith.constant 0 : index
    %c0_4 = arith.constant 0 : index
    %4 = vector.load %arg2[%c0_2, %c0_3, %c0_4] : memref<2x4x256xf32, #tpu.memory_space<vmem>>, vector<2x4x256xf32>
    %cst = arith.constant dense<0.000000e+00> : vector<2x4xf32>
    %5 = vector.multi_reduction <add>, %4, %cst [2] : vector<2x4x256xf32> to vector<2x4xf32>
    %6 = arith.addf %3, %5 : vector<2x4xf32>
    %c0_5 = arith.constant 0 : index
    %c0_6 = arith.constant 0 : index
    %7 = vector.load %arg6[%c0_5, %c0_6] : memref<2x4xf32, #tpu.memory_space<vmem>>, vector<2x4xf32>
    tpu.vector_store %arg6[%c0_5, %c0_6], %6 {strides = array<i32>} : memref<2x4xf32, #tpu.memory_space<vmem>>, vector<2x4xf32>,
    %c0_i32_7 = arith.constant 0 : i32
    %8 = arith.cmpi eq, %arg1, %c0_i32_7 : i32
    %9 = arith.extui %8 : i1 to i32
    %c0_i32_8 = arith.constant 0 : i32
    %10 = arith.cmpi ne, %9, %c0_i32_8 : i32
    scf.if %10 {
      %c0_9 = arith.constant 0 : index
      %c0_10 = arith.constant 0 : index
      %11 = vector.load %arg6[%c0_9, %c0_10] : memref<2x4xf32, #tpu.memory_space<vmem>>, vector<2x4xf32>
      %cst_11 = arith.constant 3.906250e-03 : f32
      %12 = vector.broadcast %cst_11 : f32 to vector<2x4xf32>
      %13 = arith.mulf %11, %12 : vector<2x4xf32>
      %c0_12 = arith.constant 0 : index
      %c0_13 = arith.constant 0 : index
      %14 = vector.load %arg3[%c0_12, %c0_13] : memref<4x8xf32, #tpu.memory_space<vmem>>, vector<4x8xf32>
      %cst_14 = arith.constant dense<0.000000e+00> : vector<2x8xf32>
      %15 = tpu.matmul %13, %14, %cst_14 {dimension_numbers = #tpu.dot_dimension_numbers<[1], [0], [0], [1], [0, 0, 1, 1], [], []>} : vector<2x4xf32>, vector<4x8xf32>, vector<2x8xf32> -> vector<2x8xf32>
      %c0_15 = arith.constant 0 : index
      %c0_16 = arith.constant 0 : index
      %16 = vector.load %arg4[%c0_15, %c0_16] : memref<1x8xf32, #tpu.memory_space<vmem>>, vector<1x8xf32>
      %17 = vector.broadcast %16 : vector<1x8xf32> to vector<2x8xf32>
      %18 = arith.addf %15, %17 : vector<2x8xf32>
      %c0_17 = arith.constant 0 : index
      %c0_18 = arith.constant 0 : index
      %19 = vector.load %arg5[%c0_17, %c0_18] : memref<2x8xf32, #tpu.memory_space<vmem>>, vector<2x8xf32>
      tpu.vector_store %arg5[%c0_17, %c0_18], %18 {strides = array<i32>} : memref<2x8xf32, #tpu.memory_space<vmem>>, vector<2x8xf32>,
    } else {
    }
    return
  }
  func.func @transform_0(%arg0: i32, %arg1: i32) -> (i32, i32, i32) {
    %c0_i32 = arith.constant 0 : i32
    %c0_i32_0 = arith.constant 0 : i32
    return %arg0, %c0_i32, %arg1 : i32, i32, i32
  }
  func.func @transform_1(%arg0: i32, %arg1: i32) -> (i32, i32) {
    %c0_i32 = arith.constant 0 : i32
    %c0_i32_0 = arith.constant 0 : i32
    %c0_i32_1 = arith.constant 0 : i32
    return %c0_i32, %c0_i32_0 : i32, i32
  }
  func.func @transform_2(%arg0: i32, %arg1: i32) -> (i32, i32) {
    %c0_i32 = arith.constant 0 : i32
    %c0_i32_0 = arith.constant 0 : i32
    %c0_i32_1 = arith.constant 0 : i32
    return %c0_i32, %c0_i32_0 : i32, i32
  }
  func.func @transform_3(%arg0: i32, %arg1: i32) -> (i32, i32) {
    %c0_i32 = arith.constant 0 : i32
    %c0_i32_0 = arith.constant 0 : i32
    return %arg0, %c0_i32 : i32, i32
  }
}

</mosaic_0001>

<llo_original>
// kernel: tpu_custom_call.1
$region0: #{tpu_custom_call.1}
  #allocation0 [shape = 'u32[]', space=smem, size = 0x4, offset = 0x4, fixed_abs, tag = 'smem constant byte address 0x4 - core index']
  #allocation1 [shape = 'u32[144,128]{1,0:T(1,128)}', space=vmem, size = 0x12000, scoped, tag = 'internal scratch']
  #allocation2 [shape = 'f32[2,4]{1,0:T(2,128)}', space=vmem, size = 0x400, scoped, tag = 'scratch operand']
  %s0 = inlined_call_operand.hbm [shape: f32[2,4,256], index: 0, kind: input, shape index: {}]
  %s1 = inlined_call_operand.hbm [shape: f32[4,8], index: 1, kind: input, shape index: {}]
  %s2 = inlined_call_operand.vmem [shape: f32[1,8], index: 2, kind: input, shape index: {}]
  %s3 = inlined_call_operand.hbm [shape: f32[2,8], index: 3, kind: output, shape index: {}]
  %s4 = sld [smem:[#allocation0]]
  $region38: #{tpu_custom_call.1} parent=0
    _
  %s6 = ssub.s32 1, %s4
  %s7 = scalar_select 0, %s6, %s4
  $region1: #{tpu_custom_call.1} parent=0
    #allocation3 [shape = 'u8[8192]{0}', space=vmem, size = 0x2000, scoped, tag = 'input window, operand 0, single buffered']
    #allocation4 [shape = 's32[1]{0}', space=sflag, size = 0x4, scoped, tag = 'scoped memory for tpu_custom_call.1']
    #allocation5 [shape = 's32[1]{0}', space=sflag, size = 0x4, scoped, tag = 'scoped memory for tpu_custom_call.1']
    #allocation6 [shape = 'u8[2048]{0}', space=vmem, size = 0x800, scoped, tag = 'input window, operand 1, single buffered']
    #allocation7 [shape = 's32[1]{0}', space=sflag, size = 0x4, scoped, tag = 'scoped memory for tpu_custom_call.1']
    #allocation8 [shape = 'u8[1024]{0}', space=vmem, size = 0x400, scoped, tag = 'output window, operand 0, single buffered']
    %8 = vsyncpa [#allocation4], 0
    %9 = vsyncpa [#allocation7], 0
    %10 = vsyncpa [#allocation5], 0
    // Predicated region
    $region2: #{tpu_custom_call.1} parent=1 // pred_check
      _
    $region3: #{tpu_custom_call.1} parent=1 // pred_check_branch
      %12 = sbr.rel (0) target = $region5
    $region4: #{tpu_custom_call.1} parent=1 // pred_region
      %s14 = ssub.s32 256, 256
      %15 = vsyncadd [#allocation4], %s14
      %s16 = sshll.u32 [#allocation3], 4
      %s17 = int_to_ptr.vmem [resolvable:$true] %s16
      %22 = dma.hbm_to_vmem [thread:$0]  %s0, 256, %s17, [#allocation4], 128, 128, 8
    $region5: #{tpu_custom_call.1} parent=1 // pred_fallthru
      _
    // Predicated region
    $region6: #{tpu_custom_call.1} parent=1 // pred_check
      _
    $region7: #{tpu_custom_call.1} parent=1 // pred_check_branch
      %24 = sbr.rel (0) target = $region9
    $region8: #{tpu_custom_call.1} parent=1 // pred_region
      %s26 = ssub.s32 64, 64
      %27 = vsyncadd [#allocation7], %s26
      %s29 = sshll.u32 [#allocation6], 4
      %s30 = int_to_ptr.vmem [resolvable:$true] %s29
      %32 = dma.hbm_to_vmem [thread:$0]  %s1, 64, %s30, [#allocation7]
    $region9: #{tpu_custom_call.1} parent=1 // pred_fallthru
      _
    // Predicated region
    $region10: #{tpu_custom_call.1} parent=1 // pred_check
      _
    $region11: #{tpu_custom_call.1} parent=1 // pred_check_branch
      %34 = sbr.rel (0) target = $region13
    $region12: #{tpu_custom_call.1} parent=1 // pred_region
      _
    $region13: #{tpu_custom_call.1} parent=1 // pred_fallthru
      _
    // Predicated region
    $region14: #{tpu_custom_call.1} parent=1 // pred_check
      _
    $region15: #{tpu_custom_call.1} parent=1 // pred_check_branch
      %36 = sbr.rel (0) target = $region17
    $region16: #{tpu_custom_call.1} parent=1 // pred_region
      %37 = dma.done [#allocation4], 256
    $region17: #{tpu_custom_call.1} parent=1 // pred_fallthru
      _
    // Predicated region
    $region18: #{tpu_custom_call.1} parent=1 // pred_check
      _
    $region19: #{tpu_custom_call.1} parent=1 // pred_check_branch
      %39 = sbr.rel (0) target = $region21
    $region20: #{tpu_custom_call.1} parent=1 // pred_region
      %40 = dma.done [#allocation7], 64
    $region21: #{tpu_custom_call.1} parent=1 // pred_fallthru
      _
    %p41 = scmp.eq.s32.totalorder 0, 0
    // Predicated region
    $region22: #{tpu_custom_call.1} parent=1 // pred_check
      %p42 = pneg %p41
    $region23: #{tpu_custom_call.1} parent=1 // pred_check_branch
      %44 = sbr.rel (%p42) target = $region25
    $region24: #{tpu_custom_call.1} parent=1 // pred_region
      %vm45 = vcmask 25600
      %46 = vst.msk [vmem:[#allocation2] sm:$0x3] %vm45, 0.0
    $region25: #{tpu_custom_call.1} parent=1 // pred_fallthru
      _
    %v47 = vld [vmem:[#allocation2] sm:$0x3]
    %v48 = vld [vmem:[#allocation3] sm:$0xff]
    %v49 = vld [vmem:[#allocation3 + $0x8] sm:$0xff]
    %v52 = vcombine.high %v48, %v48
    %v53 = vcombine.high %v49, %v49
    %vm56 = vcmask 1043456
    %v57 = vsel %vm56, %v48, 0.0
    %v58 = vsel %vm56, %v52, 0.0
    %v59 = vadd.f32 %v57, %v58
    %60 = vadd.xlane.f32.xlu0 %v59
    %v61 = vpop.xlane.xlu0 %60
    %v62 = vsel %vm56, %v49, 0.0
    %v63 = vsel %vm56, %v53, 0.0
    %v64 = vadd.f32 %v62, %v63
    %65 = vadd.xlane.f32.xlu0 %v64
    %v66 = vpop.xlane.xlu0 %65
    %v69 = vlaneseq
    %v70 = vand.u32 %v69, 127
    %v71 = vlaneseq
    %v72 = vshrl.u32 %v71, 7
    %v73 = vsub.s32 %v70, %v72
    %v74 = vrot.slane %v61, %v73
    %v75 = vlaneseq
    %v76 = vshrl.u32 %v75, 7
    %v77 = vsub.s32 %v70, %v76
    %v78 = vrot.slane %v66, %v77
    %vm79 = vcmask 1041409
    %v80 = vsel %vm79, %v78, %v74
    %v82 = vadd.f32 %v47, %v80
    %vm83 = vcmask 25600
    %84 = vst.msk [vmem:[#allocation2] sm:$0x3] %vm83, %v82
    // Predicated region
    $region26: #{tpu_custom_call.1} parent=1 // pred_check
      %p85 = pneg %p41
    $region27: #{tpu_custom_call.1} parent=1 // pred_check_branch
      %87 = sbr.rel (%p85) target = $region29
    $region28: #{tpu_custom_call.1} parent=1 // pred_region
      %v88 = vld [vmem:[#allocation2] sm:$0x3]
      %v89 = vmul.f32 %v88, 0.00390625
      %v90 = vld [vmem:[#allocation6] sm:$0xf]
      %v91 = vld [vmem:[%s2] sm:$0x1]
      %v93 = vlaneseq
      %v94 = vshrl.u32 %v93, 7
      %v95 = vsub.s32 0, %v94
      %v96 = vrot.slane %v91, %v95
      %vm98 = vcmask 31744
      %v100 = vsel %vm98, %v89, 0
      %v103 = vsel %vm56, %v90, 0
      %105 = vmatprep.subr.mxu0 0.0
      %106 = vmatpush1.msra.mxu0 %v103
      %107 = vmatprep.subr.mxu0 0.0
      %108 = vmatpush1.msra.mxu0 0.0
      %109 = vmatprep.subr.mxu0 0.0
      %110 = vmatpush1.msra.mxu0 0.0
      %111 = vmatprep.subr.mxu0 0.0
      %112 = vmatpush1.msra.mxu0 0.0
      %113 = vmatprep.subr.mxu0 0.0
      %114 = vmatpush1.msra.mxu0 0.0
      %115 = vmatprep.subr.mxu0 0.0
      %116 = vmatpush1.msra.mxu0 0.0
      %117 = vmatprep.subr.mxu0 0.0
      %118 = vmatpush1.msra.mxu0 0.0
      %119 = vmatprep.subr.mxu0 0.0
      %120 = vmatpush1.msra.mxu0 0.0
      %121 = vmatprep.subr.mxu0 0.0
      %122 = vmatpush1.msra.mxu0 0.0
      %123 = vmatprep.subr.mxu0 0.0
      %124 = vmatpush1.msra.mxu0 0.0
      %125 = vmatprep.subr.mxu0 0.0
      %126 = vmatpush1.msra.mxu0 0.0
      %127 = vmatprep.subr.mxu0 0.0
      %128 = vmatpush1.msra.mxu0 0.0
      %129 = vmatprep.subr.mxu0 0.0
      %130 = vmatpush1.msra.mxu0 0.0
      %131 = vmatprep.subr.mxu0 0.0
      %132 = vmatpush1.msra.mxu0 0.0
      %133 = vmatprep.subr.mxu0 0.0
      %134 = vmatpush1.msra.mxu0 0.0
      %135 = vmatprep.subr.mxu0 0.0
      %136 = vmatpush1.msra.mxu0 0.0
      %137 = vmatprep.subr.mxu0 0.0
      %138 = vmatpush1.msra.mxu0 0.0
      %139 = vmatprep.subr.mxu0 0.0
      %140 = vmatpush1.msra.mxu0 0.0
      %141 = vmatprep.subr.mxu0 0.0
      %142 = vmatpush1.msra.mxu0 0.0
      %143 = vmatprep.subr.mxu0 0.0
      %144 = vmatpush1.msra.mxu0 0.0
      %145 = vmatprep.subr.mxu0 0.0
      %146 = vmatpush1.msra.mxu0 0.0
      %147 = vmatprep.subr.mxu0 0.0
      %148 = vmatpush1.msra.mxu0 0.0
      %149 = vmatprep.subr.mxu0 0.0
      %150 = vmatpush1.msra.mxu0 0.0
      %151 = vmatprep.subr.mxu0 0.0
      %152 = vmatpush1.msra.mxu0 0.0
      %153 = vmatprep.subr.mxu0 0.0
      %154 = vmatpush1.msra.mxu0 0.0
      %155 = vmatprep.subr.mxu0 0.0
      %156 = vmatpush1.msra.mxu0 0.0
      %157 = vmatprep.subr.mxu0 0.0
      %158 = vmatpush1.msra.mxu0 0.0
      %159 = vmatprep.subr.mxu0 0.0
      %160 = vmatpush1.msra.mxu0 0.0
      %161 = vmatprep.subr.mxu0 0.0
      %162 = vmatpush1.msra.mxu0 0.0
      %163 = vmatprep.subr.mxu0 0.0
      %164 = vmatpush1.msra.mxu0 0.0
      %165 = vmatprep.subr.mxu0 0.0
      %166 = vmatpush1.msra.mxu0 0.0
      %167 = vmatprep.subr.mxu0 0.0
      %168 = vmatpush1.msra.mxu0 0.0
      %169 = vmatprep.mubr.f32.mxu0 0.0
      %170 = vmatmul.mubr.f32.gmra.mrb[0].mxu0 %v100
      %v171 = vpop.f32.mrb[0].mxu0
      %v172 = vadd.f32 %v96, %v171
      %v173 = vpop.f32.mrb[0].mxu0
      %174 = vdwg.mxu0
      %vm175 = vcmask 58368
      %176 = vst.msk [vmem:[#allocation8] sm:$0x3] %vm175, %v172
    $region29: #{tpu_custom_call.1} parent=1 // pred_fallthru
      _
    // Predicated region
    $region30: #{tpu_custom_call.1} parent=1 // pred_check
      _
    $region31: #{tpu_custom_call.1} parent=1 // pred_check_branch
      %178 = sbr.rel (0) target = $region33
    $region32: #{tpu_custom_call.1} parent=1 // pred_region
      %s180 = ssub.s32 32, 32
      %181 = vsyncadd [#allocation5], %s180
      %s183 = sshll.u32 [#allocation8], 4
      %s184 = int_to_ptr.vmem [resolvable:$true] %s183
      %186 = dma.vmem_to_hbm [thread:$0]  %s184, 32, %s3, [#allocation5]
    $region33: #{tpu_custom_call.1} parent=1 // pred_fallthru
      _
    // Predicated region
    $region34: #{tpu_custom_call.1} parent=1 // pred_check
      _
    $region35: #{tpu_custom_call.1} parent=1 // pred_check_branch
      %188 = sbr.rel (0) target = $region37
    $region36: #{tpu_custom_call.1} parent=1 // pred_region
      %189 = dma.done [#allocation5], 32
    $region37: #{tpu_custom_call.1} parent=1 // pred_fallthru
      _
    %190 = vsyncpa [#allocation4], 1
    %191 = vsyncpa [#allocation7], 1
    %192 = vsyncpa [#allocation5], 1

</llo_original>
